<compile_context>
chip_gen: v5e
topology: v5e:2x2
jax: 0.10.0
libtpu: 0.0.40
codegen_flags: <defaults>
</compile_context>

<pallas_src>
import jax
import jax.numpy as jnp
from jax.experimental import pallas as pl
from jax.experimental.pallas import tpu as pltpu

D_STATE = 16   # state feature dim
HIDDEN = 32    # features() hidden dim
N_OPT = 8      # number of options
OUT_W = 128    # lane-dense slab width (everything padded to 128 lanes)


def _round_up(x, m):
    return ((x + m - 1) // m) * m


def option_policy_kernel(s_ref, w1_ref, wh_ref, small_ref, out_ref):
    # small_ref layout (rows of an [8, 128] slab):
    #   row 0: b1 (features bias) padded to 128
    #   row 1: fused head bias (bp in cols 0..O-1, bv at col O, 0 elsewhere)
    #   row 2: initiation thresholds (cols 0..O-1), +1e30 in padding columns
    #   row 3: value-column selector (1.0 at col O, 0 elsewhere)
    s = s_ref[...]                                                     # [TB, D]

    # features(s): Linear + ReLU (single MXU pass, f32 accumulate)
    h = jnp.dot(s, w1_ref[...], preferred_element_type=jnp.float32)   # [TB, 128]
    h = jnp.maximum(h + small_ref[0:1, :], 0.0)

    # fused policy_head + value_head: one MXU pass -> lane-dense slab
    heads = jnp.dot(h, wh_ref[...], preferred_element_type=jnp.float32)
    heads = heads + small_ref[1:2, :]                                  # [TB, 128]

    # initiation mask surrogate: option o available iff mean(s) > thr[o].
    # Padding columns (>= N_OPT, incl. the value column) have thr = +1e30, so
    # they are masked to -1e20 and contribute exp(...)=0 to the softmax.
    s_mean = jnp.mean(s, axis=-1, keepdims=True)                       # [TB, 1]
    thr = small_ref[2:3, :]                                            # [1, 128]
    masked = jnp.where(s_mean > thr, heads, -1e20)                     # [TB, 128]

    # softmax over the full 128-wide slab (masked-out columns underflow to 0)
    m = jnp.max(masked, axis=-1, keepdims=True)
    e = jnp.exp(masked - m)
    denom = jnp.sum(e, axis=-1, keepdims=True)
    probs = e * pl.reciprocal(denom, approx=True)                      # [TB, 128]

    # assemble output slab: probs in option columns, raw head value at col O
    out_ref[...] = jnp.where(small_ref[3:4, :] > 0.5, heads, probs)


def option_policy_forward(s, packed_params, tb_max=128):
    """Gridded pallas_call over the batch; weights stay VMEM-resident.

    Handles arbitrary batch sizes by padding to a sublane multiple; padded rows
    are zeros (option 0 is always available -> softmax well-defined) and are
    sliced off before returning.
    """
    w1p, whp, small = packed_params
    batch = s.shape[0]
    tb = min(tb_max, _round_up(batch, 8))
    padded = _round_up(batch, tb)
    if padded != batch:
        s = jnp.concatenate(
            [s, jnp.zeros((padded - batch, s.shape[1]), s.dtype)], axis=0)

    out = pl.pallas_call(
        option_policy_kernel,
        out_shape=jax.ShapeDtypeStruct((padded, OUT_W), jnp.float32),
        grid=(padded // tb,),
        in_specs=[
            pl.BlockSpec((tb, D_STATE), lambda i: (i, 0)),     # activations stream
            pl.BlockSpec((D_STATE, OUT_W), lambda i: (0, 0)),  # weights resident
            pl.BlockSpec((OUT_W, OUT_W), lambda i: (0, 0)),
            pl.BlockSpec((8, OUT_W), lambda i: (0, 0)),
        ],
        out_specs=pl.BlockSpec((tb, OUT_W), lambda i: (i, 0)),
        compiler_params=pltpu.CompilerParams(
            dimension_semantics=("parallel",)),
    )(s, w1p, whp, small)

    probs = out[:batch, :N_OPT]
    value = out[:batch, N_OPT:N_OPT + 1]
    return probs, value


def init_params(key):
    """Logical (unpacked) parameters, shapes implied by the module."""
    k1, k2, k3, k4 = jax.random.split(key, 4)
    w1 = jax.random.normal(k1, (D_STATE, HIDDEN), jnp.float32) * 0.1
    b1 = jnp.zeros((HIDDEN,), jnp.float32)
    wp = jax.random.normal(k2, (HIDDEN, N_OPT), jnp.float32) * 0.1
    bp = jnp.zeros((N_OPT,), jnp.float32)
    wv = jax.random.normal(k3, (HIDDEN, 1), jnp.float32) * 0.1
    bv = jnp.zeros((1,), jnp.float32)
    thr = jax.random.uniform(k4, (N_OPT,), jnp.float32, -0.2, 0.2)
    thr = thr.at[0].set(-1e9)   # option 0 always available -> softmax never NaN
    return (w1, b1, wp, bp, wv, bv, thr)


def pack_params(params):
    """Host-side packing: fused heads, padded weights, single small-param slab."""
    w1, b1, wp, bp, wv, bv, thr = params
    w1p = jnp.zeros((D_STATE, OUT_W), jnp.float32).at[:, :HIDDEN].set(w1)
    whp = jnp.zeros((OUT_W, OUT_W), jnp.float32)
    whp = whp.at[:HIDDEN, :N_OPT].set(wp)
    whp = whp.at[:HIDDEN, N_OPT:N_OPT + 1].set(wv)
    small = jnp.zeros((8, OUT_W), jnp.float32)
    small = small.at[0, :HIDDEN].set(b1)
    small = small.at[1, :N_OPT].set(bp)
    small = small.at[1, N_OPT].set(bv[0])
    small = small.at[2, :].set(1e30)        # padding / value columns never initiate
    small = small.at[2, :N_OPT].set(thr)
    small = small.at[3, N_OPT].set(1.0)     # value-column selector
    return (w1p, whp, small)


def reference_forward(s, params):
    """Pure-JAX reference of the PyTorch module (for correctness check)."""
    w1, b1, wp, bp, wv, bv, thr = params
    h = jnp.maximum(s @ w1 + b1, 0.0)
    logits = h @ wp + bp
    value = h @ wv + bv
    init = jnp.mean(s, axis=-1, keepdims=True) > thr[None, :]
    masked = jnp.where(init, logits, -1e20)
    probs = jax.nn.softmax(masked, axis=-1)
    return probs, value


if __name__ == "__main__":
    B = 8  # small example batch; wrapper also handles large rollout batches
    key = jax.random.PRNGKey(0)
    k_s, k_p = jax.random.split(key)
    s = jax.random.normal(k_s, (B, D_STATE), jnp.float32)
    params = init_params(k_p)
    packed = pack_params(params)

    probs, value = option_policy_forward(s, packed)
    probs = jax.block_until_ready(probs)
    value = jax.block_until_ready(value)

    assert probs.shape == (B, N_OPT) and value.shape == (B, 1)
    # categorical probabilities sum to 1 per row (approx reciprocal tolerance)
    assert jnp.allclose(jnp.sum(probs, axis=-1), 1.0, atol=5e-3)

    ref_probs, ref_value = reference_forward(s, params)
    assert jnp.allclose(probs, ref_probs, atol=5e-3, rtol=5e-3)
    assert jnp.allclose(value, ref_value, atol=5e-3, rtol=5e-3)
    print("KERNEL_OK")
</pallas_src>

<mosaic_0001>
module attributes {stable_mosaic.version = 11 : i64} {
  func.func @option_policy_kernel(%arg0: i32, %arg1: memref<8x16xf32, #tpu.memory_space<vmem>>, %arg2: memref<16x128xf32, #tpu.memory_space<vmem>>, %arg3: memref<128x128xf32, #tpu.memory_space<vmem>>, %arg4: memref<8x128xf32, #tpu.memory_space<vmem>>, %arg5: memref<8x128xf32, #tpu.memory_space<vmem>>) attributes {dimension_semantics = [#tpu.dimension_semantics<parallel>], iteration_bounds = array<i64: 1>, scalar_prefetch = 0 : i64, scratch_operands = 0 : i64, tpu.core_type = #tpu.core_type<tc>, window_params = [{transform_indices = @transform_0, window_bounds = array<i64: 8, 16>}, {pipeline_mode = #tpu.pipeline_mode<synchronous>, transform_indices = @transform_1, window_bounds = array<i64: 16, 128>}, {pipeline_mode = #tpu.pipeline_mode<synchronous>, transform_indices = @transform_2, window_bounds = array<i64: 128, 128>}, {pipeline_mode = #tpu.pipeline_mode<synchronous>, transform_indices = @transform_3, window_bounds = array<i64: 8, 128>}, {transform_indices = @transform_4, window_bounds = array<i64: 8, 128>}]} {
    %c0 = arith.constant 0 : index
    %c0_0 = arith.constant 0 : index
    %0 = vector.load %arg1[%c0, %c0_0] : memref<8x16xf32, #tpu.memory_space<vmem>>, vector<8x16xf32>
    %c0_1 = arith.constant 0 : index
    %c0_2 = arith.constant 0 : index
    %1 = vector.load %arg2[%c0_1, %c0_2] : memref<16x128xf32, #tpu.memory_space<vmem>>, vector<16x128xf32>
    %cst = arith.constant dense<0.000000e+00> : vector<8x128xf32>
    %2 = tpu.matmul %0, %1, %cst {dimension_numbers = #tpu.dot_dimension_numbers<[1], [0], [0], [1], [0, 0, 1, 1], [], []>} : vector<8x16xf32>, vector<16x128xf32>, vector<8x128xf32> -> vector<8x128xf32>
    %c0_3 = arith.constant 0 : index
    %c0_4 = arith.constant 0 : index
    %3 = vector.load %arg4[%c0_3, %c0_4] : memref<8x128xf32, #tpu.memory_space<vmem>>, vector<1x128xf32>
    %4 = vector.broadcast %3 : vector<1x128xf32> to vector<8x128xf32>
    %5 = arith.addf %2, %4 : vector<8x128xf32>
    %cst_5 = arith.constant 0.000000e+00 : f32
    %6 = vector.broadcast %cst_5 : f32 to vector<8x128xf32>
    %7 = arith.maximumf %5, %6 : vector<8x128xf32>
    %c0_6 = arith.constant 0 : index
    %c0_7 = arith.constant 0 : index
    %8 = vector.load %arg3[%c0_6, %c0_7] : memref<128x128xf32, #tpu.memory_space<vmem>>, vector<128x128xf32>
    %cst_8 = arith.constant dense<0.000000e+00> : vector<8x128xf32>
    %9 = tpu.matmul %7, %8, %cst_8 {dimension_numbers = #tpu.dot_dimension_numbers<[1], [0], [0], [1], [0, 0, 1, 1], [], []>} : vector<8x128xf32>, vector<128x128xf32>, vector<8x128xf32> -> vector<8x128xf32>
    %c1 = arith.constant 1 : index
    %c0_9 = arith.constant 0 : index
    %10 = vector.load %arg4[%c1, %c0_9] : memref<8x128xf32, #tpu.memory_space<vmem>>, vector<1x128xf32>
    %11 = vector.broadcast %10 : vector<1x128xf32> to vector<8x128xf32>
    %12 = arith.addf %9, %11 : vector<8x128xf32>
    %cst_10 = arith.constant dense<0.000000e+00> : vector<8xf32>
    %13 = vector.multi_reduction <add>, %0, %cst_10 [1] : vector<8x16xf32> to vector<8xf32>
    %14 = vector.shape_cast %13 : vector<8xf32> to vector<8x1xf32>
    %cst_11 = arith.constant 1.600000e+01 : f32
    %15 = vector.broadcast %cst_11 : f32 to vector<8x1xf32>
    %16 = arith.divf %14, %15 : vector<8x1xf32>
    %c2 = arith.constant 2 : index
    %c0_12 = arith.constant 0 : index
    %17 = vector.load %arg4[%c2, %c0_12] : memref<8x128xf32, #tpu.memory_space<vmem>>, vector<1x128xf32>
    %18 = vector.broadcast %16 : vector<8x1xf32> to vector<8x128xf32>
    %19 = vector.broadcast %17 : vector<1x128xf32> to vector<8x128xf32>
    %20 = arith.cmpf ogt, %18, %19 : vector<8x128xf32>
    %cst_13 = arith.constant -1.000000e+20 : f32
    %21 = vector.broadcast %cst_13 : f32 to vector<8x128xf32>
    %22 = arith.select %20, %12, %21 : vector<8x128xi1>, vector<8x128xf32>
    %cst_14 = arith.constant dense<0xFF800000> : vector<8xf32>
    %23 = vector.multi_reduction <maximumf>, %22, %cst_14 [1] : vector<8x128xf32> to vector<8xf32>
    %24 = vector.shape_cast %23 : vector<8xf32> to vector<8x1xf32>
    %25 = vector.broadcast %24 : vector<8x1xf32> to vector<8x128xf32>
    %26 = arith.subf %22, %25 : vector<8x128xf32>
    %27 = math.exp %26 : vector<8x128xf32>
    %cst_15 = arith.constant dense<0.000000e+00> : vector<8xf32>
    %28 = vector.multi_reduction <add>, %27, %cst_15 [1] : vector<8x128xf32> to vector<8xf32>
    %29 = vector.shape_cast %28 : vector<8xf32> to vector<8x1xf32>
    %30 = tpu.reciprocal %29 {approx = true} : vector<8x1xf32> -> vector<8x1xf32>
    %31 = vector.broadcast %30 : vector<8x1xf32> to vector<8x128xf32>
    %32 = arith.mulf %27, %31 : vector<8x128xf32>
    %c3 = arith.constant 3 : index
    %c0_16 = arith.constant 0 : index
    %33 = vector.load %arg4[%c3, %c0_16] : memref<8x128xf32, #tpu.memory_space<vmem>>, vector<1x128xf32>
    %cst_17 = arith.constant 5.000000e-01 : f32
    %34 = vector.broadcast %cst_17 : f32 to vector<1x128xf32>
    %35 = arith.cmpf ogt, %33, %34 : vector<1x128xf32>
    %36 = vector.shape_cast %35 : vector<1x128xi1> to vector<1x128xi1>
    %37 = vector.broadcast %36 : vector<1x128xi1> to vector<8x128xi1>
    %38 = arith.select %37, %12, %32 : vector<8x128xi1>, vector<8x128xf32>
    %c0_18 = arith.constant 0 : index
    %c0_19 = arith.constant 0 : index
    %39 = vector.load %arg5[%c0_18, %c0_19] : memref<8x128xf32, #tpu.memory_space<vmem>>, vector<8x128xf32>
    tpu.vector_store %arg5[%c0_18, %c0_19], %38 {strides = array<i32>} : memref<8x128xf32, #tpu.memory_space<vmem>>, vector<8x128xf32>,
    return
  }
  func.func @transform_0(%arg0: i32) -> (i32, i32) {
    %c0_i32 = arith.constant 0 : i32
    %c0_i32_0 = arith.constant 0 : i32
    return %arg0, %c0_i32 : i32, i32
  }
  func.func @transform_1(%arg0: i32) -> (i32, i32) {
    %c0_i32 = arith.constant 0 : i32
    %c0_i32_0 = arith.constant 0 : i32
    %c0_i32_1 = arith.constant 0 : i32
    return %c0_i32, %c0_i32_0 : i32, i32
  }
  func.func @transform_2(%arg0: i32) -> (i32, i32) {
    %c0_i32 = arith.constant 0 : i32
    %c0_i32_0 = arith.constant 0 : i32
    %c0_i32_1 = arith.constant 0 : i32
    return %c0_i32, %c0_i32_0 : i32, i32
  }
  func.func @transform_3(%arg0: i32) -> (i32, i32) {
    %c0_i32 = arith.constant 0 : i32
    %c0_i32_0 = arith.constant 0 : i32
    %c0_i32_1 = arith.constant 0 : i32
    return %c0_i32, %c0_i32_0 : i32, i32
  }
  func.func @transform_4(%arg0: i32) -> (i32, i32) {
    %c0_i32 = arith.constant 0 : i32
    %c0_i32_0 = arith.constant 0 : i32
    return %arg0, %c0_i32 : i32, i32
  }
}

</mosaic_0001>

<llo_original>
// kernel: tpu_custom_call.1
$region0: #{tpu_custom_call.1}
  #allocation0 [shape = 'u32[]', space=smem, size = 0x4, offset = 0x4, fixed_abs, tag = 'smem constant byte address 0x4 - core index']
  #allocation1 [shape = 'u32[72,128]{1,0:T(1,128)}', space=vmem, size = 0x9000, scoped, tag = 'internal scratch']
  %s0 = inlined_call_operand.hbm [shape: f32[8,16], index: 0, kind: input, shape index: {}]
  %s1 = inlined_call_operand.hbm [shape: f32[16,128], index: 1, kind: input, shape index: {}]
  %s2 = inlined_call_operand.hbm [shape: f32[128,128], index: 2, kind: input, shape index: {}]
  %s3 = inlined_call_operand.hbm [shape: f32[8,128], index: 3, kind: input, shape index: {}]
  %s4 = inlined_call_operand.hbm [shape: f32[8,128], index: 4, kind: output, shape index: {}]
  %s5 = sld [smem:[#allocation0]]
  $region42: #{tpu_custom_call.1} parent=0
    _
  %s7 = ssub.s32 1, %s5
  %s8 = scalar_select 0, %s7, %s5
  $region1: #{tpu_custom_call.1} parent=0
    #allocation2 [shape = 'u8[4096]{0}', space=vmem, size = 0x1000, scoped, tag = 'input window, operand 0, single buffered']
    #allocation3 [shape = 's32[1]{0}', space=sflag, size = 0x4, scoped, tag = 'scoped memory for tpu_custom_call.1']
    #allocation4 [shape = 's32[1]{0}', space=sflag, size = 0x4, scoped, tag = 'scoped memory for tpu_custom_call.1']
    #allocation5 [shape = 'u8[8192]{0}', space=vmem, size = 0x2000, scoped, tag = 'input window, operand 1, single buffered']
    #allocation6 [shape = 's32[1]{0}', space=sflag, size = 0x4, scoped, tag = 'scoped memory for tpu_custom_call.1']
    #allocation7 [shape = 'u8[65536]{0}', space=vmem, size = 0x10000, scoped, tag = 'input window, operand 2, single buffered']
    #allocation8 [shape = 'u8[4096]{0}', space=vmem, size = 0x1000, scoped, tag = 'input window, operand 3, single buffered']
    #allocation9 [shape = 's32[1]{0}', space=sflag, size = 0x4, scoped, tag = 'scoped memory for tpu_custom_call.1']
    #allocation10 [shape = 'u8[4096]{0}', space=vmem, size = 0x1000, scoped, tag = 'output window, operand 0, single buffered']
    %9 = vsyncpa [#allocation3], 0
    %10 = vsyncpa [#allocation6], 0
    %11 = vsyncpa [#allocation9], 0
    %12 = vsyncpa [#allocation4], 0
    // Predicated region
    $region2: #{tpu_custom_call.1} parent=1 // pred_check
      _
    $region3: #{tpu_custom_call.1} parent=1 // pred_check_branch
      %14 = sbr.rel (0) target = $region5
    $region4: #{tpu_custom_call.1} parent=1 // pred_region
      %16 = vsyncadd [#allocation3], 0
      %s18 = sshll.u32 %s0, 4
      %s19 = int_to_ptr.hbm [resolvable:$true] %s18
      %s20 = sshll.u32 [#allocation2], 4
      %s21 = int_to_ptr.vmem [resolvable:$true] %s20
      %23 = dma.hbm_to_vmem [thread:$0]  %s19, 128, %s21, [#allocation3]
    $region5: #{tpu_custom_call.1} parent=1 // pred_fallthru
      _
    // Predicated region
    $region6: #{tpu_custom_call.1} parent=1 // pred_check
      _
    $region7: #{tpu_custom_call.1} parent=1 // pred_check_branch
      %25 = sbr.rel (0) target = $region9
    $region8: #{tpu_custom_call.1} parent=1 // pred_region
      %27 = vsyncadd [#allocation6], 0
      %s28 = sshll.u32 %s1, 4
      %s29 = int_to_ptr.hbm [resolvable:$true] %s28
      %s30 = sshll.u32 [#allocation5], 4
      %s31 = int_to_ptr.vmem [resolvable:$true] %s30
      %36 = dma.hbm_to_vmem [thread:$0]  %s29, 256, %s31, [#allocation6], 128, 128, 8
    $region9: #{tpu_custom_call.1} parent=1 // pred_fallthru
      _
    // Predicated region
    $region10: #{tpu_custom_call.1} parent=1 // pred_check
      _
    $region11: #{tpu_custom_call.1} parent=1 // pred_check_branch
      %38 = sbr.rel (0) target = $region13
    $region12: #{tpu_custom_call.1} parent=1 // pred_region
      %40 = vsyncadd [#allocation6], 0
      %s41 = sshll.u32 %s2, 4
      %s42 = int_to_ptr.hbm [resolvable:$true] %s41
      %s43 = sshll.u32 [#allocation7], 4
      %s44 = int_to_ptr.vmem [resolvable:$true] %s43
      %49 = dma.hbm_to_vmem [thread:$0]  %s42, 2048, %s44, [#allocation6], 128, 128, 8
    $region13: #{tpu_custom_call.1} parent=1 // pred_fallthru
      _
    // Predicated region
    $region14: #{tpu_custom_call.1} parent=1 // pred_check
      _
    $region15: #{tpu_custom_call.1} parent=1 // pred_check_branch
      %51 = sbr.rel (0) target = $region17
    $region16: #{tpu_custom_call.1} parent=1 // pred_region
      %53 = vsyncadd [#allocation9], 0
      %s55 = sshll.u32 %s3, 4
      %s56 = int_to_ptr.hbm [resolvable:$true] %s55
      %s57 = sshll.u32 [#allocation8], 4
      %s58 = int_to_ptr.vmem [resolvable:$true] %s57
      %60 = dma.hbm_to_vmem [thread:$0]  %s56, 128, %s58, [#allocation9]
    $region17: #{tpu_custom_call.1} parent=1 // pred_fallthru
      _
    // Predicated region
    $region18: #{tpu_custom_call.1} parent=1 // pred_check
      _
    $region19: #{tpu_custom_call.1} parent=1 // pred_check_branch
      %62 = sbr.rel (0) target = $region21
    $region20: #{tpu_custom_call.1} parent=1 // pred_region
      %64 = dma.done [#allocation3], 128
    $region21: #{tpu_custom_call.1} parent=1 // pred_fallthru
      _
    // Predicated region
    $region22: #{tpu_custom_call.1} parent=1 // pred_check
      _
    $region23: #{tpu_custom_call.1} parent=1 // pred_check_branch
      %66 = sbr.rel (0) target = $region25
    $region24: #{tpu_custom_call.1} parent=1 // pred_region
      %68 = dma.done [#allocation6], 256
    $region25: #{tpu_custom_call.1} parent=1 // pred_fallthru
      _
    // Predicated region
    $region26: #{tpu_custom_call.1} parent=1 // pred_check
      _
    $region27: #{tpu_custom_call.1} parent=1 // pred_check_branch
      %70 = sbr.rel (0) target = $region29
    $region28: #{tpu_custom_call.1} parent=1 // pred_region
      %72 = dma.done [#allocation6], 2048
    $region29: #{tpu_custom_call.1} parent=1 // pred_fallthru
      _
    // Predicated region
    $region30: #{tpu_custom_call.1} parent=1 // pred_check
      _
    $region31: #{tpu_custom_call.1} parent=1 // pred_check_branch
      %74 = sbr.rel (0) target = $region33
    $region32: #{tpu_custom_call.1} parent=1 // pred_region
      %76 = dma.done [#allocation9], 128
    $region33: #{tpu_custom_call.1} parent=1 // pred_fallthru
      _
    %v77 = vld [vmem:[#allocation2] sm:$0xff]
    %v78 = vld [vmem:[#allocation5] sm:$0xff]
    %v79 = vld [vmem:[#allocation5 + $0x8] sm:$0xff]
    %v80 = vld [vmem:[#allocation8] sm:$0x1]
    %v81 = vperm.slane %v80, 0
    %vm82 = vcmask 130048
    %v84 = vsel %vm82, %v77, 0
    %86 = vmatpush.msra.mxu0 0.0
    %87 = vmatpush.msra.mxu0 0.0
    %88 = vmatpush.msra.mxu0 0.0
    %89 = vmatpush.msra.mxu0 0.0
    %90 = vmatpush.msra.mxu0 0.0
    %91 = vmatpush.msra.mxu0 0.0
    %92 = vmatpush.msra.mxu0 0.0
    %93 = vmatpush.msra.mxu0 0.0
    %94 = vmatpush.msra.mxu0 0.0
    %95 = vmatpush.msra.mxu0 0.0
    %96 = vmatpush.msra.mxu0 0.0
    %97 = vmatpush.msra.mxu0 0.0
    %98 = vmatpush.msra.mxu0 0.0
    %99 = vmatpush.msra.mxu0 0.0
    %100 = vmatpush.msra.mxu0 %v79
    %101 = vmatpush.msra.mxu0 %v78
    %102 = vmatmul.f32.gmra.mxu0 %v84
    %v103 = vpop.f32.mrf.mxu0
    %v104 = vadd.f32 %v81, %v103
    %105 = vdwg.mxu0
    %v106 = vmax.f32 %v104, 0.0
    %v107 = vld [vmem:[#allocation7] sm:$0xff]
    %v108 = vld [vmem:[#allocation7 + $0x8] sm:$0xff]
    %v109 = vld [vmem:[#allocation7 + $0x10] sm:$0xff]
    %v110 = vld [vmem:[#allocation7 + $0x18] sm:$0xff]
    %v111 = vld [vmem:[#allocation7 + $0x20] sm:$0xff]
    %v112 = vld [vmem:[#allocation7 + $0x28] sm:$0xff]
    %v113 = vld [vmem:[#allocation7 + $0x30] sm:$0xff]
    %v114 = vld [vmem:[#allocation7 + $0x38] sm:$0xff]
    %v115 = vld [vmem:[#allocation7 + $0x40] sm:$0xff]
    %v116 = vld [vmem:[#allocation7 + $0x48] sm:$0xff]
    %v117 = vld [vmem:[#allocation7 + $0x50] sm:$0xff]
    %v118 = vld [vmem:[#allocation7 + $0x58] sm:$0xff]
    %v119 = vld [vmem:[#allocation7 + $0x60] sm:$0xff]
    %v120 = vld [vmem:[#allocation7 + $0x68] sm:$0xff]
    %v121 = vld [vmem:[#allocation7 + $0x70] sm:$0xff]
    %v122 = vld [vmem:[#allocation7 + $0x78] sm:$0xff]
    %v123 = vld [vmem:[#allocation8 + $0x1] sm:$0x1]
    %v124 = vperm.slane %v123, 0
    %125 = vmatpush.msra.mxu0 %v122
    %126 = vmatpush.msra.mxu0 %v121
    %127 = vmatpush.msra.mxu0 %v120
    %128 = vmatpush.msra.mxu0 %v119
    %129 = vmatpush.msra.mxu0 %v118
    %130 = vmatpush.msra.mxu0 %v117
    %131 = vmatpush.msra.mxu0 %v116
    %132 = vmatpush.msra.mxu0 %v115
    %133 = vmatpush.msra.mxu0 %v114
    %134 = vmatpush.msra.mxu0 %v113
    %135 = vmatpush.msra.mxu0 %v112
    %136 = vmatpush.msra.mxu0 %v111
    %137 = vmatpush.msra.mxu0 %v110
    %138 = vmatpush.msra.mxu0 %v109
    %139 = vmatpush.msra.mxu0 %v108
    %140 = vmatpush.msra.mxu0 %v107
    %141 = vmatmul.f32.gmra.mxu0 %v106
    %v142 = vpop.f32.mrf.mxu0
    %v143 = vadd.f32 %v124, %v142
    %144 = vdwg.mxu0
    %v145 = vsel %vm82, %v77, 0.0
    %146 = vadd.xlane.f32.xlu0 %v145
    %v147 = vpop.xlane.xlu0 %146
    %v148 = vrcp.pop 16.0
    %v149 = vmul.f32 16.0, %v148
    %v150 = vsub.f32 1.0, %v149
    %v151 = vmul.f32 %v148, %v150
    %v152 = vadd.f32 %v148, %v151
    %vm153 = vweird.f32 %v148
    %v154 = vsel %vm153, %v148, %v152
    %v155 = vmul.f32 %v147, %v154
    %v156 = vld [vmem:[#allocation8 + $0x2] sm:$0x1]
    %v157 = vperm.slane %v156, 0
    %vm158 = vcmp.gt.f32.partialorder %v155, %v157
    %v159 = vsel %vm158, %v143, -1e+20
    %160 = vmax.xlane.f32.xlu0 %v159
    %v161 = vpop.xlane.xlu0 %160
    %v162 = vsub.f32 %v159, %v161
    %v163 = vmul.f32 %v162, 1.442695
    %v164 = vpow.pop %v163
    %165 = vadd.xlane.f32.xlu0 %v164
    %v166 = vpop.xlane.xlu0 %165
    %v167 = vrcp.pop %v166
    %v168 = vmul.f32 %v164, %v167
    %v169 = vld [vmem:[#allocation8 + $0x3] sm:$0x1]
    %vm170 = vcmp.gt.f32.partialorder %v169, 0.5
    %v171 = vsel %vm170, 1, 0
    %v172 = vperm.slane %v171, 0
    %vm173 = vcmp.eq.s32.totalorder %v172, 1
    %v174 = vsel %vm173, %v143, %v168
    %175 = vst [vmem:[#allocation10] sm:$0xff] %v174
    // Predicated region
    $region34: #{tpu_custom_call.1} parent=1 // pred_check
      _
    $region35: #{tpu_custom_call.1} parent=1 // pred_check_branch
      %177 = sbr.rel (0) target = $region37
    $region36: #{tpu_custom_call.1} parent=1 // pred_region
      %179 = vsyncadd [#allocation4], 0
      %s181 = sshll.u32 [#allocation10], 4
      %s182 = int_to_ptr.vmem [resolvable:$true] %s181
      %s183 = sshll.u32 %s4, 4
      %s184 = int_to_ptr.hbm [resolvable:$true] %s183
      %186 = dma.vmem_to_hbm [thread:$0]  %s182, 128, %s184, [#allocation4]
    $region37: #{tpu_custom_call.1} parent=1 // pred_fallthru
      _
    // Predicated region
    $region38: #{tpu_custom_call.1} parent=1 // pred_check
      _
    $region39: #{tpu_custom_call.1} parent=1 // pred_check_branch
      %188 = sbr.rel (0) target = $region41
    $region40: #{tpu_custom_call.1} parent=1 // pred_region
      %190 = dma.done [#allocation4], 128
    $region41: #{tpu_custom_call.1} parent=1 // pred_fallthru
      _
    %191 = vsyncpa [#allocation3], 1
    %192 = vsyncpa [#allocation6], 1
    %193 = vsyncpa [#allocation9], 1
    %194 = vsyncpa [#allocation4], 1

</llo_original>
